<compile_context>
chip_gen: v7x
topology: tpu7x:2x2x1
jax: 0.10.0
libtpu: 0.0.40
codegen_flags: <defaults>
</compile_context>

<pallas_src>
import functools

import jax
import jax.numpy as jnp
from jax import lax
from jax.experimental import pallas as pl
from jax.experimental.pallas import tpu as pltpu


def stgcn_block_kernel(x_ref, w1_ref, b1_ref, akr_ref, w2_ref, b2_ref,
                       out_ref, *, seq_len, batch_block):
    # x_ref:   (1, Cin_p, Bt*N*L)    pre-merged lane-dense input tile
    # w1_ref:  (Cout_p, 3*Cin_p)     temporal1 taps, fused along contraction
    # b1_ref:  (Cout_p, 1)
    # akr_ref: (N*L, N*L)            kron(adj, I_L): spatial mix in lane space
    # w2_ref:  (Cout_p, 3*Cout_p)    temporal2 taps, fused along contraction
    # b2_ref:  (Cout_p, 1)
    # out_ref: (1, Cout_p, Bt*N*L)   lane-dense output tile
    Cout_p = out_ref.shape[1]
    lanes = out_ref.shape[2]
    NL = lanes // batch_block
    L = seq_len

    x = x_ref[0].astype(jnp.float32)          # (Cin_p, lanes), already lane-merged

    # lane-position masks for the conv edges (l == 0 / l == L-1 within each node);
    # node/batch lane offsets are multiples of L, so roll wrap-around is always masked.
    l_pos = lax.broadcasted_iota(jnp.int32, (1, lanes), 1) % L
    not_first = l_pos != 0
    not_last = l_pos != (L - 1)

    def taps(v):
        # im2col along the contraction axis: rows = [value@(l-1); value@l; value@(l+1)]
        prev = jnp.where(not_first, pltpu.roll(v, 1, axis=1), 0.0)
        nxt = jnp.where(not_last, pltpu.roll(v, lanes - 1, axis=1), 0.0)
        return jnp.concatenate([prev, v, nxt], axis=0)

    # ---- temporal1: fused 1x3 conv as one MXU matmul, then bias + ReLU (VPU) ----
    h = jnp.dot(w1_ref[...], taps(x), preferred_element_type=jnp.float32)
    h = jnp.maximum(h + b1_ref[...], 0.0)

    # ---- spatial: s[c, m*L+l] = sum_n adj[n, m] * h[c, n*L+l]  ->  h @ kron(adj, I_L) ----
    akr = akr_ref[...]
    if batch_block == 1:
        s = jnp.dot(h, akr, preferred_element_type=jnp.float32)
    else:
        # restack the Bt lane slices along the sublane axis (tile-aligned moves),
        # one MXU matmul, then unstack back to the lane-merged layout.
        h_st = jnp.concatenate(
            [h[:, b * NL:(b + 1) * NL] for b in range(batch_block)], axis=0)
        s_st = jnp.dot(h_st, akr, preferred_element_type=jnp.float32)
        s = jnp.concatenate(
            [s_st[b * Cout_p:(b + 1) * Cout_p, :] for b in range(batch_block)],
            axis=1)

    # ---- temporal2: fused 1x3 conv as one MXU matmul, then bias ----
    y = jnp.dot(w2_ref[...], taps(s), preferred_element_type=jnp.float32)
    y = y + b2_ref[...]

    out_ref[0] = y.astype(out_ref.dtype)       # lane-dense store


def _round_up(v, m):
    return (v + m - 1) // m * m


def _num_tensorcores_per_chip():
    # v4 / v5p / v7x expose 2 TensorCores per chip to a single Pallas grid
    # (megacore / "parallel" sharding); v5e / v6e have 1.
    try:
        kind = jax.devices()[0].device_kind.lower()
    except Exception:
        return 1
    return 2 if any(t in kind for t in ("v4", "v5p", "v7", "7x")) else 1


def _pick_batch_block(batch, num_tc, per_batch_flops, nl):
    # vreg-pressure cap: keep the merged lane extent <= 1024 (~8 lane-vregs) and Bt <= 8.
    cap = max(1, min(batch, 8, 1024 // max(nl, 1)))
    divisors = [d for d in range(1, cap + 1) if batch % d == 0]
    # Split into 2 'parallel' grid steps only on multi-TC chips AND when each step
    # carries enough MXU work to amortize the per-step / cross-TC overhead (~0.5 us).
    want_two_steps = (num_tc >= 2 and batch >= 2
                      and per_batch_flops * (batch // 2) >= 4_000_000)
    best = 1
    for d in divisors:                       # ascending -> keeps the largest valid Bt
        if want_two_steps and batch // d < 2:
            continue
        best = d
    return best


def stgcn_block(x_nchw, adj, w1, b1, w2, b2):
    """x_nchw: (B, Cin, N, L); adj: (N, N); conv weights in PyTorch layout
    (Cout, Cin, 1, 3) / (Cout, Cout, 1, 3), biases (Cout,). Returns NCHW."""
    B, Cin, N, L = x_nchw.shape
    Cout = w1.shape[0]
    NL = N * L
    f32 = jnp.float32

    Cin_p = _round_up(Cin, 8)      # sublane-align channels so tap concat is tile-aligned
    Cout_p = _round_up(Cout, 8)

    per_batch_flops = 2 * NL * (Cout_p * 3 * Cin_p + Cout_p * NL + Cout_p * 3 * Cout_p)
    num_tc = _num_tensorcores_per_chip()
    Bt = _pick_batch_block(B, num_tc, per_batch_flops, NL)
    G = B // Bt                    # number of grid steps

    # lane-dense NCHW-flattened input, channel-padded, then batch-merged along lanes
    # (one-time XLA reshape/transpose; the kernel never relayouts).
    x_flat = x_nchw.reshape(B, Cin, NL).astype(f32)
    if Cin_p != Cin:
        x_flat = jnp.pad(x_flat, ((0, 0), (0, Cin_p - Cin), (0, 0)))
    x_m = (x_flat.reshape(G, Bt, Cin_p, NL)
           .transpose(0, 2, 1, 3)
           .reshape(G, Cin_p, Bt * NL))

    # conv weights (Cout, Cin, 1, 3) -> fused channels-first matmul weights
    # W[c_out, k*Cin_p + c_in] = w[c_out, c_in, 0, k]
    w1k = jnp.transpose(w1[:, :, 0, :].astype(f32), (0, 2, 1))        # (Cout, 3, Cin)
    w1k = jnp.pad(w1k, ((0, Cout_p - Cout), (0, 0), (0, Cin_p - Cin)))
    w1k = w1k.reshape(Cout_p, 3 * Cin_p)
    w2k = jnp.transpose(w2[:, :, 0, :].astype(f32), (0, 2, 1))        # (Cout, 3, Cout)
    w2k = jnp.pad(w2k, ((0, Cout_p - Cout), (0, 0), (0, Cout_p - Cout)))
    w2k = w2k.reshape(Cout_p, 3 * Cout_p)
    b1r = jnp.pad(b1.astype(f32), (0, Cout_p - Cout)).reshape(Cout_p, 1)
    b2r = jnp.pad(b2.astype(f32), (0, Cout_p - Cout)).reshape(Cout_p, 1)

    # spatial mixing lifted to lane space: kron(adj, I_L) is (N*L, N*L), batch-shared
    akr = jnp.kron(adj.astype(f32), jnp.eye(L, dtype=f32))

    # VMEM budget (double-buffered blocks + constants + activation headroom), clamped
    # well under v7x's 64 MiB physical VMEM; also raises v5e's 16 MiB default scope.
    block_bytes = 4 * (Bt * Cin_p * NL + Bt * Cout_p * NL)
    const_bytes = 4 * (NL * NL + 3 * Cin_p * Cout_p + 3 * Cout_p * Cout_p + 2 * Cout_p)
    live_bytes = 4 * (8 * Cout_p * Bt * NL)
    vmem_needed = 2 * (block_bytes + const_bytes) + live_bytes
    vmem_limit = int(min(max(4 * vmem_needed, 32 * 1024 * 1024), 48 * 1024 * 1024))

    cost = pl.CostEstimate(
        flops=int(B * per_batch_flops),
        transcendentals=0,
        bytes_accessed=int(4 * (B * Cin_p * NL + B * Cout_p * NL) + const_bytes),
    )

    kernel = functools.partial(stgcn_block_kernel, seq_len=L, batch_block=Bt)

    out = pl.pallas_call(
        kernel,
        out_shape=jax.ShapeDtypeStruct((G, Cout_p, Bt * NL), f32),
        grid_spec=pltpu.PrefetchScalarGridSpec(
            num_scalar_prefetch=0,
            grid=(G,),
            in_specs=[
                pl.BlockSpec((1, Cin_p, Bt * NL), lambda i: (i, 0, 0)),
                pl.BlockSpec((Cout_p, 3 * Cin_p), lambda i: (0, 0)),
                pl.BlockSpec((Cout_p, 1), lambda i: (0, 0)),
                pl.BlockSpec((NL, NL), lambda i: (0, 0)),
                pl.BlockSpec((Cout_p, 3 * Cout_p), lambda i: (0, 0)),
                pl.BlockSpec((Cout_p, 1), lambda i: (0, 0)),
            ],
            out_specs=pl.BlockSpec((1, Cout_p, Bt * NL), lambda i: (i, 0, 0)),
        ),
        compiler_params=pltpu.CompilerParams(
            dimension_semantics=("parallel",),
            vmem_limit_bytes=vmem_limit),
        cost_estimate=cost,
    )(x_m, w1k, b1r, akr, w2k, b2r)

    # un-merge batches, drop channel padding, un-flatten (one-time XLA transpose)
    out = (out.reshape(G, Cout_p, Bt, NL)
           .transpose(0, 2, 1, 3)
           .reshape(B, Cout_p, NL))
    out = out[:, :Cout, :].reshape(B, Cout, N, L).astype(x_nchw.dtype)
    return out


def stgcn_block_reference(x, adj, w1, b1, w2, b2):
    """Pure-JAX reference matching the PyTorch forward exactly (NCHW)."""
    dn = ("NCHW", "OIHW", "NCHW")
    y = lax.conv_general_dilated(x, w1, (1, 1), ((0, 0), (1, 1)),
                                 dimension_numbers=dn)
    y = y + b1.reshape(1, -1, 1, 1)
    y = jnp.maximum(y, 0.0)
    y = jnp.einsum("bcnl,nm->bcml", y, adj)
    y = lax.conv_general_dilated(y, w2, (1, 1), ((0, 0), (1, 1)),
                                 dimension_numbers=dn)
    y = y + b2.reshape(1, -1, 1, 1)
    return y


if __name__ == "__main__":
    # small shapes consistent with the module's forward (N*L = 128 -> lane-dense)
    B, Cin, Cout, N, L = 2, 4, 8, 16, 8

    key = jax.random.PRNGKey(0)
    k1, k2, k3, k4, k5, k6 = jax.random.split(key, 6)

    x = jax.random.normal(k1, (B, Cin, N, L), dtype=jnp.float32)
    adj = jax.random.normal(k2, (N, N), dtype=jnp.float32)

    # deterministic parameter init (Conv2d shapes from __init__)
    w1 = 0.1 * jax.random.normal(k3, (Cout, Cin, 1, 3), dtype=jnp.float32)
    b1 = 0.1 * jax.random.normal(k4, (Cout,), dtype=jnp.float32)
    w2 = 0.1 * jax.random.normal(k5, (Cout, Cout, 1, 3), dtype=jnp.float32)
    b2 = 0.1 * jax.random.normal(k6, (Cout,), dtype=jnp.float32)

    out = jax.block_until_ready(stgcn_block(x, adj, w1, b1, w2, b2))

    ref = stgcn_block_reference(x, adj, w1, b1, w2, b2)
    assert out.shape == (B, Cout, N, L)
    max_err = jnp.max(jnp.abs(out - ref))
    assert jnp.allclose(out, ref, atol=1e-4, rtol=1e-4), f"max abs err {max_err}"

    print("KERNEL_OK")
</pallas_src>

<mosaic_0001>
module attributes {stable_mosaic.version = 11 : i64} {
  func.func @stgcn_block_kernel(%arg0: i32, %arg1: memref<1x8x256xf32, #tpu.memory_space<vmem>>, %arg2: memref<8x24xf32, #tpu.memory_space<vmem>>, %arg3: memref<8x1xf32, #tpu.memory_space<vmem>>, %arg4: memref<128x128xf32, #tpu.memory_space<vmem>>, %arg5: memref<8x24xf32, #tpu.memory_space<vmem>>, %arg6: memref<8x1xf32, #tpu.memory_space<vmem>>, %arg7: memref<1x8x256xf32, #tpu.memory_space<vmem>>) attributes {dimension_semantics = [#tpu.dimension_semantics<parallel>], iteration_bounds = array<i64: 1>, scalar_prefetch = 0 : i64, scratch_operands = 0 : i64, tpu.core_type = #tpu.core_type<tc>, window_params = [{transform_indices = @transform_0, window_bounds = array<i64: 1, 8, 256>}, {pipeline_mode = #tpu.pipeline_mode<synchronous>, transform_indices = @transform_1, window_bounds = array<i64: 8, 24>}, {pipeline_mode = #tpu.pipeline_mode<synchronous>, transform_indices = @transform_2, window_bounds = array<i64: 8, 1>}, {pipeline_mode = #tpu.pipeline_mode<synchronous>, transform_indices = @transform_3, window_bounds = array<i64: 128, 128>}, {pipeline_mode = #tpu.pipeline_mode<synchronous>, transform_indices = @transform_4, window_bounds = array<i64: 8, 24>}, {pipeline_mode = #tpu.pipeline_mode<synchronous>, transform_indices = @transform_5, window_bounds = array<i64: 8, 1>}, {transform_indices = @transform_6, window_bounds = array<i64: 1, 8, 256>}]} {
    %c0 = arith.constant 0 : index
    %c0_0 = arith.constant 0 : index
    %c0_1 = arith.constant 0 : index
    %0 = vector.load %arg1[%c0, %c0_0, %c0_1] : memref<1x8x256xf32, #tpu.memory_space<vmem>>, vector<1x8x256xf32>
    %1 = vector.shape_cast %0 : vector<1x8x256xf32> to vector<8x256xf32>
    %2 = tpu.iota {dimensions = array<i32: 1>} : vector<1x256xi32>
    %c8_i32 = arith.constant 8 : i32
    %c0_i32 = arith.constant 0 : i32
    %3 = arith.cmpi eq, %c8_i32, %c0_i32 : i32
    %c1_i32 = arith.constant 1 : i32
    %4 = arith.select %3, %c1_i32, %c8_i32 : i32
    %5 = vector.broadcast %4 : i32 to vector<1x256xi32>
    %6 = arith.remsi %2, %5 : vector<1x256xi32>
    %c0_i32_2 = arith.constant 0 : i32
    %7 = vector.broadcast %c0_i32_2 : i32 to vector<1x256xi32>
    %8 = arith.cmpi ne, %6, %7 : vector<1x256xi32>
    %c0_i32_3 = arith.constant 0 : i32
    %9 = vector.broadcast %c0_i32_3 : i32 to vector<1x256xi32>
    %10 = arith.cmpi slt, %6, %9 : vector<1x256xi32>
    %c0_i32_4 = arith.constant 0 : i32
    %11 = arith.cmpi slt, %4, %c0_i32_4 : i32
    %12 = vector.broadcast %11 : i1 to vector<1x256xi1>
    %13 = vector.broadcast %12 : vector<1x256xi1> to vector<1x256xi1>
    %14 = arith.xori %10, %13 : vector<1x256xi1>
    %15 = arith.andi %14, %8 : vector<1x256xi1>
    %16 = vector.broadcast %4 : i32 to vector<1x256xi32>
    %17 = arith.addi %6, %16 : vector<1x256xi32>
    %18 = arith.select %15, %17, %6 : vector<1x256xi1>, vector<1x256xi32>
    %c0_i32_5 = arith.constant 0 : i32
    %19 = vector.broadcast %c0_i32_5 : i32 to vector<1x256xi32>
    %20 = arith.cmpi ne, %18, %19 : vector<1x256xi32>
    %c7_i32 = arith.constant 7 : i32
    %21 = vector.broadcast %c7_i32 : i32 to vector<1x256xi32>
    %22 = arith.cmpi ne, %18, %21 : vector<1x256xi32>
    %c0_6 = arith.constant 0 : index
    %c0_7 = arith.constant 0 : index
    %23 = vector.load %arg2[%c0_6, %c0_7] : memref<8x24xf32, #tpu.memory_space<vmem>>, vector<8x24xf32>
    %c1_i32_8 = arith.constant 1 : i32
    %24 = tpu.dynamic_rotate %1 by %c1_i32_8 dim 1 : vector<8x256xf32>, i32 -> vector<8x256xf32>
    %cst = arith.constant 0.000000e+00 : f32
    %25 = vector.shape_cast %20 : vector<1x256xi1> to vector<1x256xi1>
    %26 = vector.broadcast %25 : vector<1x256xi1> to vector<8x256xi1>
    %27 = vector.broadcast %cst : f32 to vector<8x256xf32>
    %28 = arith.select %26, %24, %27 : vector<8x256xi1>, vector<8x256xf32>
    %c255_i32 = arith.constant 255 : i32
    %29 = tpu.dynamic_rotate %1 by %c255_i32 dim 1 : vector<8x256xf32>, i32 -> vector<8x256xf32>
    %cst_9 = arith.constant 0.000000e+00 : f32
    %30 = vector.shape_cast %22 : vector<1x256xi1> to vector<1x256xi1>
    %31 = vector.broadcast %30 : vector<1x256xi1> to vector<8x256xi1>
    %32 = vector.broadcast %cst_9 : f32 to vector<8x256xf32>
    %33 = arith.select %31, %29, %32 : vector<8x256xi1>, vector<8x256xf32>
    %34 = tpu.concatenate %28, %1, %33 in 0 : vector<8x256xf32>, vector<8x256xf32>, vector<8x256xf32> -> vector<24x256xf32>
    %cst_10 = arith.constant dense<0.000000e+00> : vector<8x256xf32>
    %35 = tpu.matmul %23, %34, %cst_10 {dimension_numbers = #tpu.dot_dimension_numbers<[1], [0], [0], [1], [0, 0, 1, 1], [], []>} : vector<8x24xf32>, vector<24x256xf32>, vector<8x256xf32> -> vector<8x256xf32>
    %c0_11 = arith.constant 0 : index
    %c0_12 = arith.constant 0 : index
    %36 = vector.load %arg3[%c0_11, %c0_12] : memref<8x1xf32, #tpu.memory_space<vmem>>, vector<8x1xf32>
    %37 = vector.broadcast %36 : vector<8x1xf32> to vector<8x256xf32>
    %38 = arith.addf %35, %37 : vector<8x256xf32>
    %cst_13 = arith.constant 0.000000e+00 : f32
    %39 = vector.broadcast %cst_13 : f32 to vector<8x256xf32>
    %40 = arith.maximumf %38, %39 : vector<8x256xf32>
    %c0_14 = arith.constant 0 : index
    %c0_15 = arith.constant 0 : index
    %41 = vector.load %arg4[%c0_14, %c0_15] : memref<128x128xf32, #tpu.memory_space<vmem>>, vector<128x128xf32>
    %42 = vector.extract_strided_slice %40 {offsets = [0, 0], sizes = [8, 128], strides = [1, 1]} : vector<8x256xf32> to vector<8x128xf32>
    %43 = vector.extract_strided_slice %40 {offsets = [0, 128], sizes = [8, 128], strides = [1, 1]} : vector<8x256xf32> to vector<8x128xf32>
    %44 = tpu.concatenate %42, %43 in 0 : vector<8x128xf32>, vector<8x128xf32> -> vector<16x128xf32>
    %cst_16 = arith.constant dense<0.000000e+00> : vector<16x128xf32>
    %45 = tpu.matmul %44, %41, %cst_16 {dimension_numbers = #tpu.dot_dimension_numbers<[1], [0], [0], [1], [0, 0, 1, 1], [], []>} : vector<16x128xf32>, vector<128x128xf32>, vector<16x128xf32> -> vector<16x128xf32>
    %46 = vector.extract_strided_slice %45 {offsets = [0, 0], sizes = [8, 128], strides = [1, 1]} : vector<16x128xf32> to vector<8x128xf32>
    %47 = vector.extract_strided_slice %45 {offsets = [8, 0], sizes = [8, 128], strides = [1, 1]} : vector<16x128xf32> to vector<8x128xf32>
    %48 = tpu.concatenate %46, %47 in 1 : vector<8x128xf32>, vector<8x128xf32> -> vector<8x256xf32>
    %c0_17 = arith.constant 0 : index
    %c0_18 = arith.constant 0 : index
    %49 = vector.load %arg5[%c0_17, %c0_18] : memref<8x24xf32, #tpu.memory_space<vmem>>, vector<8x24xf32>
    %c1_i32_19 = arith.constant 1 : i32
    %50 = tpu.dynamic_rotate %48 by %c1_i32_19 dim 1 : vector<8x256xf32>, i32 -> vector<8x256xf32>
    %cst_20 = arith.constant 0.000000e+00 : f32
    %51 = vector.shape_cast %20 : vector<1x256xi1> to vector<1x256xi1>
    %52 = vector.broadcast %51 : vector<1x256xi1> to vector<8x256xi1>
    %53 = vector.broadcast %cst_20 : f32 to vector<8x256xf32>
    %54 = arith.select %52, %50, %53 : vector<8x256xi1>, vector<8x256xf32>
    %c255_i32_21 = arith.constant 255 : i32
    %55 = tpu.dynamic_rotate %48 by %c255_i32_21 dim 1 : vector<8x256xf32>, i32 -> vector<8x256xf32>
    %cst_22 = arith.constant 0.000000e+00 : f32
    %56 = vector.shape_cast %22 : vector<1x256xi1> to vector<1x256xi1>
    %57 = vector.broadcast %56 : vector<1x256xi1> to vector<8x256xi1>
    %58 = vector.broadcast %cst_22 : f32 to vector<8x256xf32>
    %59 = arith.select %57, %55, %58 : vector<8x256xi1>, vector<8x256xf32>
    %60 = tpu.concatenate %54, %48, %59 in 0 : vector<8x256xf32>, vector<8x256xf32>, vector<8x256xf32> -> vector<24x256xf32>
    %cst_23 = arith.constant dense<0.000000e+00> : vector<8x256xf32>
    %61 = tpu.matmul %49, %60, %cst_23 {dimension_numbers = #tpu.dot_dimension_numbers<[1], [0], [0], [1], [0, 0, 1, 1], [], []>} : vector<8x24xf32>, vector<24x256xf32>, vector<8x256xf32> -> vector<8x256xf32>
    %c0_24 = arith.constant 0 : index
    %c0_25 = arith.constant 0 : index
    %62 = vector.load %arg6[%c0_24, %c0_25] : memref<8x1xf32, #tpu.memory_space<vmem>>, vector<8x1xf32>
    %63 = vector.broadcast %62 : vector<8x1xf32> to vector<8x256xf32>
    %64 = arith.addf %61, %63 : vector<8x256xf32>
    %c0_26 = arith.constant 0 : index
    %c0_27 = arith.constant 0 : index
    %c0_28 = arith.constant 0 : index
    %65 = vector.load %arg7[%c0_26, %c0_27, %c0_28] : memref<1x8x256xf32, #tpu.memory_space<vmem>>, vector<1x8x256xf32>
    %66 = vector.shape_cast %65 : vector<1x8x256xf32> to vector<8x256xf32>
    %67 = vector.shape_cast %64 : vector<8x256xf32> to vector<1x8x256xf32>
    tpu.vector_store %arg7[%c0_26, %c0_27, %c0_28], %67 {strides = array<i32>} : memref<1x8x256xf32, #tpu.memory_space<vmem>>, vector<1x8x256xf32>,
    return
  }
  func.func @transform_0(%arg0: i32) -> (i32, i32, i32) {
    %c0_i32 = arith.constant 0 : i32
    %c0_i32_0 = arith.constant 0 : i32
    %c0_i32_1 = arith.constant 0 : i32
    return %arg0, %c0_i32, %c0_i32_0 : i32, i32, i32
  }
  func.func @transform_1(%arg0: i32) -> (i32, i32) {
    %c0_i32 = arith.constant 0 : i32
    %c0_i32_0 = arith.constant 0 : i32
    %c0_i32_1 = arith.constant 0 : i32
    return %c0_i32, %c0_i32_0 : i32, i32
  }
  func.func @transform_2(%arg0: i32) -> (i32, i32) {
    %c0_i32 = arith.constant 0 : i32
    %c0_i32_0 = arith.constant 0 : i32
    %c0_i32_1 = arith.constant 0 : i32
    return %c0_i32, %c0_i32_0 : i32, i32
  }
  func.func @transform_3(%arg0: i32) -> (i32, i32) {
    %c0_i32 = arith.constant 0 : i32
    %c0_i32_0 = arith.constant 0 : i32
    %c0_i32_1 = arith.constant 0 : i32
    return %c0_i32, %c0_i32_0 : i32, i32
  }
  func.func @transform_4(%arg0: i32) -> (i32, i32) {
    %c0_i32 = arith.constant 0 : i32
    %c0_i32_0 = arith.constant 0 : i32
    %c0_i32_1 = arith.constant 0 : i32
    return %c0_i32, %c0_i32_0 : i32, i32
  }
  func.func @transform_5(%arg0: i32) -> (i32, i32) {
    %c0_i32 = arith.constant 0 : i32
    %c0_i32_0 = arith.constant 0 : i32
    %c0_i32_1 = arith.constant 0 : i32
    return %c0_i32, %c0_i32_0 : i32, i32
  }
  func.func @transform_6(%arg0: i32) -> (i32, i32, i32) {
    %c0_i32 = arith.constant 0 : i32
    %c0_i32_0 = arith.constant 0 : i32
    %c0_i32_1 = arith.constant 0 : i32
    return %arg0, %c0_i32, %c0_i32_0 : i32, i32, i32
  }
}

</mosaic_0001>

<llo_original>
// kernel: tpu_custom_call.1
$region0: #{tpu_custom_call.1}
  #allocation0 [shape = 'u32[]', space=smem, size = 0x4, offset = 0x4, fixed_abs, tag = 'smem constant byte address 0x4 - core index']
  #allocation1 [shape = 'u32[144,128]{1,0:T(1,128)}', space=vmem, size = 0x12000, scoped, tag = 'internal scratch']
  %s0 = inlined_call_operand.vmem [shape: f32[1,8,256], index: 0, kind: input, shape index: {}]
  %s1 = inlined_call_operand.hbm [shape: f32[8,24], index: 1, kind: input, shape index: {}]
  %s2 = inlined_call_operand.vmem [shape: f32[8,1], index: 2, kind: input, shape index: {}]
  %s3 = inlined_call_operand.hbm [shape: f32[128,128], index: 3, kind: input, shape index: {}]
  %s4 = inlined_call_operand.vmem [shape: f32[8,24], index: 4, kind: input, shape index: {}]
  %s5 = inlined_call_operand.vmem [shape: f32[8,1], index: 5, kind: input, shape index: {}]
  %s6 = inlined_call_operand.hbm [shape: f32[1,8,256], index: 6, kind: output, shape index: {}]
  %s7 = sld [smem:[#allocation0]]
  $region42: #{tpu_custom_call.1} parent=0
    _
  %s9 = ssub.s32 1, %s7
  %s10 = scalar_select 0, %s9, %s7
  $region1: #{tpu_custom_call.1} parent=0
    #allocation2 [shape = 'u8[4096]{0}', space=vmem, size = 0x1000, scoped, tag = 'input window, operand 1, single buffered']
    #allocation3 [shape = 's32[1]{0}', space=sflag, size = 0x4, scoped, tag = 'scoped memory for tpu_custom_call.1']
    #allocation4 [shape = 's32[1]{0}', space=sflag, size = 0x4, scoped, tag = 'scoped memory for tpu_custom_call.1']
    #allocation5 [shape = 'u8[65536]{0}', space=vmem, size = 0x10000, scoped, tag = 'input window, operand 3, single buffered']
    #allocation6 [shape = 's32[1]{0}', space=sflag, size = 0x4, scoped, tag = 'scoped memory for tpu_custom_call.1']
    #allocation7 [shape = 'u8[8192]{0}', space=vmem, size = 0x2000, scoped, tag = 'output window, operand 0, single buffered']
    %11 = vsyncpa [#allocation3], 0
    %12 = vsyncpa [#allocation6], 0
    %13 = vsyncpa [#allocation4], 0
    // Predicated region
    $region2: #{tpu_custom_call.1} parent=1 // pred_check
      _
    $region3: #{tpu_custom_call.1} parent=1 // pred_check_branch
      %15 = sbr.rel (0) target = $region5
    $region4: #{tpu_custom_call.1} parent=1 // pred_region
      _
    $region5: #{tpu_custom_call.1} parent=1 // pred_fallthru
      _
    // Predicated region
    $region6: #{tpu_custom_call.1} parent=1 // pred_check
      _
    $region7: #{tpu_custom_call.1} parent=1 // pred_check_branch
      %17 = sbr.rel (0) target = $region9
    $region8: #{tpu_custom_call.1} parent=1 // pred_region
      %s19 = ssub.s32 128, 128
      %20 = vsyncadd [#allocation3], %s19
      %s22 = sshll.u32 [#allocation2], 4
      %s23 = int_to_ptr.vmem [resolvable:$true] %s22
      %25 = dma.hbm_to_vmem [thread:$0]  %s1, 128, %s23, [#allocation3]
    $region9: #{tpu_custom_call.1} parent=1 // pred_fallthru
      _
    // Predicated region
    $region10: #{tpu_custom_call.1} parent=1 // pred_check
      _
    $region11: #{tpu_custom_call.1} parent=1 // pred_check_branch
      %27 = sbr.rel (0) target = $region13
    $region12: #{tpu_custom_call.1} parent=1 // pred_region
      _
    $region13: #{tpu_custom_call.1} parent=1 // pred_fallthru
      _
    // Predicated region
    $region14: #{tpu_custom_call.1} parent=1 // pred_check
      _
    $region15: #{tpu_custom_call.1} parent=1 // pred_check_branch
      %29 = sbr.rel (0) target = $region17
    $region16: #{tpu_custom_call.1} parent=1 // pred_region
      %s31 = ssub.s32 2048, 2048
      %32 = vsyncadd [#allocation6], %s31
      %s33 = sshll.u32 [#allocation5], 4
      %s34 = int_to_ptr.vmem [resolvable:$true] %s33
      %39 = dma.hbm_to_vmem [thread:$0]  %s3, 2048, %s34, [#allocation6], 128, 128, 8
    $region17: #{tpu_custom_call.1} parent=1 // pred_fallthru
      _
    // Predicated region
    $region18: #{tpu_custom_call.1} parent=1 // pred_check
      _
    $region19: #{tpu_custom_call.1} parent=1 // pred_check_branch
      %41 = sbr.rel (0) target = $region21
    $region20: #{tpu_custom_call.1} parent=1 // pred_region
      _
    $region21: #{tpu_custom_call.1} parent=1 // pred_fallthru
      _
    // Predicated region
    $region22: #{tpu_custom_call.1} parent=1 // pred_check
      _
    $region23: #{tpu_custom_call.1} parent=1 // pred_check_branch
      %43 = sbr.rel (0) target = $region25
    $region24: #{tpu_custom_call.1} parent=1 // pred_region
      _
    $region25: #{tpu_custom_call.1} parent=1 // pred_fallthru
      _
    // Predicated region
    $region26: #{tpu_custom_call.1} parent=1 // pred_check
      _
    $region27: #{tpu_custom_call.1} parent=1 // pred_check_branch
      %45 = sbr.rel (0) target = $region29
    $region28: #{tpu_custom_call.1} parent=1 // pred_region
      %46 = dma.done [#allocation3], 128
    $region29: #{tpu_custom_call.1} parent=1 // pred_fallthru
      _
    // Predicated region
    $region30: #{tpu_custom_call.1} parent=1 // pred_check
      _
    $region31: #{tpu_custom_call.1} parent=1 // pred_check_branch
      %48 = sbr.rel (0) target = $region33
    $region32: #{tpu_custom_call.1} parent=1 // pred_region
      %49 = dma.done [#allocation6], 2048
    $region33: #{tpu_custom_call.1} parent=1 // pred_fallthru
      _
    %v50 = vld [vmem:[%s0] sm:$0xff]
    %v51 = vld [vmem:[%s0 + $0x8] sm:$0xff]
    %v52 = vlaneseq
    %v53 = vand.u32 %v52, 127
    %v54 = vadd.s32 %v53, 128
    %vm55 = vcmp.lt.s32.totalorder %v53, 0
    %v56 = vsub.s32 0, %v53
    %v57 = vsel %vm55, %v56, %v53
    %v58 = vshrl.u32 %v57, 3
    %v59 = vand.u32 %v57, 7
    %v60 = vsub.s32 0, %v59
    %v61 = vsel %vm55, %v60, %v59
    %vm62 = vcmp.lt.s32.totalorder %v54, 0
    %v63 = vsub.s32 0, %v54
    %v64 = vsel %vm62, %v63, %v54
    %v65 = vshrl.u32 %v64, 3
    %v66 = vand.u32 %v64, 7
    %v67 = vsub.s32 0, %v66
    %v68 = vsel %vm62, %v67, %v66
    %vm69 = vcmp.ne.s32.totalorder %v61, 0
    %vm70 = vcmp.ne.s32.totalorder %v68, 0
    %vm71 = vcmp.lt.s32.totalorder %v61, 0
    %vm72 = vcmp.lt.s32.totalorder %v68, 0
    %vm73 = vmand %vm71, %vm69
    %vm74 = vmand %vm72, %vm70
    %v75 = vadd.s32 %v61, 8
    %v76 = vadd.s32 %v68, 8
    %v77 = vsel %vm73, %v75, %v61
    %v78 = vsel %vm74, %v76, %v68
    %vm79 = vcmp.ne.s32.totalorder %v77, 0
    %vm80 = vcmp.ne.s32.totalorder %v78, 0
    %vm81 = vcmp.ne.s32.totalorder %v77, 7
    %vm82 = vcmp.ne.s32.totalorder %v78, 7
    %v83 = vld [vmem:[#allocation2] sm:$0xff]
    %84 = vrot.lane.b32.xlu0 %v50, 1
    %v85 = vpop.permute.xlu0 %84
    %86 = vrot.lane.b32.xlu0 %v51, 1
    %v87 = vpop.permute.xlu0 %86
    %vm88 = vcmp.lt.s32.totalorder %v53, 1
    %v89 = vsel %vm88, %v85, %v87
    %v90 = vsel %vm88, %v87, %v85
    %v91 = vsel %vm79, 1, 0
    %v92 = vsel %vm80, 1, 0
    %vm93 = vcmp.eq.s32.totalorder %v91, 1
    %vm94 = vcmp.eq.s32.totalorder %v92, 1
    %v95 = vsel %vm93, %v90, 0.0
    %v96 = vsel %vm94, %v89, 0.0
    %97 = vrot.lane.b32.xlu0 %v50, 127
    %v98 = vpop.permute.xlu0 %97
    %99 = vrot.lane.b32.xlu0 %v51, 127
    %v100 = vpop.permute.xlu0 %99
    %vm101 = vcmp.lt.s32.totalorder %v53, 127
    %v102 = vsel %vm101, %v98, %v100
    %v103 = vsel %vm101, %v100, %v98
    %v104 = vsel %vm81, 1, 0
    %v105 = vsel %vm82, 1, 0
    %vm106 = vcmp.eq.s32.totalorder %v104, 1
    %vm107 = vcmp.eq.s32.totalorder %v105, 1
    %v108 = vsel %vm106, %v102, 0.0
    %v109 = vsel %vm107, %v103, 0.0
    %v110 = vld [vmem:[%s2] sm:$0xff]
    %112 = vset.pattern.permute.xlu0 0
    %113 = vperm.xlu0 %112, %v110
    %v114 = vpop.permute.xlu0 %113
    %vm116 = vcmask 195584
    %v118 = vsel %vm116, %v83, 0
    %120 = vmatprep.subr.mxu0 %v96
    %121 = vmatpush1.msra.mxu0 %v95
    %122 = vmatprep.subr.mxu0 %v51
    %123 = vmatpush1.msra.mxu0 %v50
    %124 = vmatprep.subr.mxu0 %v109
    %125 = vmatpush1.msra.mxu0 %v108
    %126 = vmatprep.subr.mxu0 0.0
    %127 = vmatpush1.msra.mxu0 0.0
    %128 = vmatprep.subr.mxu0 0.0
    %129 = vmatpush1.msra.mxu0 0.0
    %130 = vmatprep.subr.mxu0 0.0
    %131 = vmatpush1.msra.mxu0 0.0
    %132 = vmatprep.subr.mxu0 0.0
    %133 = vmatpush1.msra.mxu0 0.0
    %134 = vmatprep.subr.mxu0 0.0
    %135 = vmatpush1.msra.mxu0 0.0
    %136 = vmatprep.subr.mxu0 0.0
    %137 = vmatpush1.msra.mxu0 0.0
    %138 = vmatprep.subr.mxu0 0.0
    %139 = vmatpush1.msra.mxu0 0.0
    %140 = vmatprep.subr.mxu0 0.0
    %141 = vmatpush1.msra.mxu0 0.0
    %142 = vmatprep.subr.mxu0 0.0
    %143 = vmatpush1.msra.mxu0 0.0
    %144 = vmatprep.subr.mxu0 0.0
    %145 = vmatpush1.msra.mxu0 0.0
    %146 = vmatprep.subr.mxu0 0.0
    %147 = vmatpush1.msra.mxu0 0.0
    %148 = vmatprep.subr.mxu0 0.0
    %149 = vmatpush1.msra.mxu0 0.0
    %150 = vmatprep.subr.mxu0 0.0
    %151 = vmatpush1.msra.mxu0 0.0
    %152 = vmatprep.subr.mxu0 0.0
    %153 = vmatpush1.msra.mxu0 0.0
    %154 = vmatprep.subr.mxu0 0.0
    %155 = vmatpush1.msra.mxu0 0.0
    %156 = vmatprep.subr.mxu0 0.0
    %157 = vmatpush1.msra.mxu0 0.0
    %158 = vmatprep.subr.mxu0 0.0
    %159 = vmatpush1.msra.mxu0 0.0
    %160 = vmatprep.subr.mxu0 0.0
    %161 = vmatpush1.msra.mxu0 0.0
    %162 = vmatprep.subr.mxu0 0.0
    %163 = vmatpush1.msra.mxu0 0.0
    %164 = vmatprep.subr.mxu0 0.0
    %165 = vmatpush1.msra.mxu0 0.0
    %166 = vmatprep.subr.mxu0 0.0
    %167 = vmatpush1.msra.mxu0 0.0
    %168 = vmatprep.subr.mxu0 0.0
    %169 = vmatpush1.msra.mxu0 0.0
    %170 = vmatprep.subr.mxu0 0.0
    %171 = vmatpush1.msra.mxu0 0.0
    %172 = vmatprep.subr.mxu0 0.0
    %173 = vmatpush1.msra.mxu0 0.0
    %174 = vmatprep.subr.mxu0 0.0
    %175 = vmatpush1.msra.mxu0 0.0
    %176 = vmatprep.subr.mxu0 0.0
    %177 = vmatpush1.msra.mxu0 0.0
    %178 = vmatprep.subr.mxu0 0.0
    %179 = vmatpush1.msra.mxu0 0.0
    %180 = vmatprep.subr.mxu0 0.0
    %181 = vmatpush1.msra.mxu0 0.0
    %182 = vmatprep.subr.mxu0 0.0
    %183 = vmatpush1.msra.mxu0 0.0
    %184 = vmatprep.mubr.f32.mxu0 0.0
    %185 = vmatmul.mubr.f32.gmra.mrb[0].mxu0 %v118
    %v186 = vpop.f32.mrb[0].mxu0
    %v187 = vadd.f32 %v114, %v186
    %v188 = vpop.f32.mrb[0].mxu0
    %v189 = vadd.f32 %v114, %v188
    %190 = vdwg.mxu0
    %v191 = vmax.f32 %v187, 0.0
    %v192 = vmax.f32 %v189, 0.0
    %v193 = vld [vmem:[#allocation5] sm:$0xff]
    %v194 = vld [vmem:[#allocation5 + $0x8] sm:$0xff]
    %v195 = vld [vmem:[#allocation5 + $0x10] sm:$0xff]
    %v196 = vld [vmem:[#allocation5 + $0x18] sm:$0xff]
    %v197 = vld [vmem:[#allocation5 + $0x20] sm:$0xff]
    %v198 = vld [vmem:[#allocation5 + $0x28] sm:$0xff]
    %v199 = vld [vmem:[#allocation5 + $0x30] sm:$0xff]
    %v200 = vld [vmem:[#allocation5 + $0x38] sm:$0xff]
    %v201 = vld [vmem:[#allocation5 + $0x40] sm:$0xff]
    %v202 = vld [vmem:[#allocation5 + $0x48] sm:$0xff]
    %v203 = vld [vmem:[#allocation5 + $0x50] sm:$0xff]
    %v204 = vld [vmem:[#allocation5 + $0x58] sm:$0xff]
    %v205 = vld [vmem:[#allocation5 + $0x60] sm:$0xff]
    %v206 = vld [vmem:[#allocation5 + $0x68] sm:$0xff]
    %v207 = vld [vmem:[#allocation5 + $0x70] sm:$0xff]
    %v208 = vld [vmem:[#allocation5 + $0x78] sm:$0xff]
    %209 = vmatprep.subr.mxu0 0.0
    %210 = vmatpush1.msra.mxu0 %v193
    %211 = vmatprep.subr.mxu0 0.0
    %212 = vmatpush1.msra.mxu0 %v194
    %213 = vmatprep.subr.mxu0 0.0
    %214 = vmatpush1.msra.mxu0 %v195
    %215 = vmatprep.subr.mxu0 0.0
    %216 = vmatpush1.msra.mxu0 %v196
    %217 = vmatprep.subr.mxu0 0.0
    %218 = vmatpush1.msra.mxu0 %v197
    %219 = vmatprep.subr.mxu0 0.0
    %220 = vmatpush1.msra.mxu0 %v198
    %221 = vmatprep.subr.mxu0 0.0
    %222 = vmatpush1.msra.mxu0 %v199
    %223 = vmatprep.subr.mxu0 0.0
    %224 = vmatpush1.msra.mxu0 %v200
    %225 = vmatprep.subr.mxu0 0.0
    %226 = vmatpush1.msra.mxu0 %v201
    %227 = vmatprep.subr.mxu0 0.0
    %228 = vmatpush1.msra.mxu0 %v202
    %229 = vmatprep.subr.mxu0 0.0
    %230 = vmatpush1.msra.mxu0 %v203
    %231 = vmatprep.subr.mxu0 0.0
    %232 = vmatpush1.msra.mxu0 %v204
    %233 = vmatprep.subr.mxu0 0.0
    %234 = vmatpush1.msra.mxu0 %v205
    %235 = vmatprep.subr.mxu0 0.0
    %236 = vmatpush1.msra.mxu0 %v206
    %237 = vmatprep.subr.mxu0 0.0
    %238 = vmatpush1.msra.mxu0 %v207
    %239 = vmatprep.subr.mxu0 0.0
    %240 = vmatpush1.msra.mxu0 %v208
    %241 = vmatprep.subr.mxu0 0.0
    %242 = vmatpush1.msra.mxu0 0.0
    %243 = vmatprep.subr.mxu0 0.0
    %244 = vmatpush1.msra.mxu0 0.0
    %245 = vmatprep.subr.mxu0 0.0
    %246 = vmatpush1.msra.mxu0 0.0
    %247 = vmatprep.subr.mxu0 0.0
    %248 = vmatpush1.msra.mxu0 0.0
    %249 = vmatprep.subr.mxu0 0.0
    %250 = vmatpush1.msra.mxu0 0.0
    %251 = vmatprep.subr.mxu0 0.0
    %252 = vmatpush1.msra.mxu0 0.0
    %253 = vmatprep.subr.mxu0 0.0
    %254 = vmatpush1.msra.mxu0 0.0
    %255 = vmatprep.subr.mxu0 0.0
    %256 = vmatpush1.msra.mxu0 0.0
    %257 = vmatprep.subr.mxu0 0.0
    %258 = vmatpush1.msra.mxu0 0.0
    %259 = vmatprep.subr.mxu0 0.0
    %260 = vmatpush1.msra.mxu0 0.0
    %261 = vmatprep.subr.mxu0 0.0
    %262 = vmatpush1.msra.mxu0 0.0
    %263 = vmatprep.subr.mxu0 0.0
    %264 = vmatpush1.msra.mxu0 0.0
    %265 = vmatprep.subr.mxu0 0.0
    %266 = vmatpush1.msra.mxu0 0.0
    %267 = vmatprep.subr.mxu0 0.0
    %268 = vmatpush1.msra.mxu0 0.0
    %269 = vmatprep.subr.mxu0 0.0
    %270 = vmatpush1.msra.mxu0 0.0
    %271 = vmatprep.subr.mxu0 0.0
    %272 = vmatpush1.msra.mxu0 0.0
    %273 = vmatprep.mubr.f32.mxu0 0.0
    %274 = vmatmul.mubr.f32.gmra.mrb[0].mxu0 %v191
    %v275 = vpop.f32.mrb[0].mxu0
    %v276 = vadd.f32 0.0, %v275
    %v277 = vpop.f32.mrb[0].mxu0
    %278 = vmatprep.mubr.f32.mxu0 0.0
    %279 = vmatmul.mubr.f32.gmra.mrb[0].mxu0 %v192
    %v280 = vpop.f32.mrb[0].mxu0
    %v281 = vadd.f32 0.0, %v280
    %v282 = vpop.f32.mrb[0].mxu0
    %283 = vdwg.mxu0
    %v284 = vld [vmem:[%s4] sm:$0xff]
    %285 = vrot.lane.b32.xlu0 %v276, 1
    %v286 = vpop.permute.xlu0 %285
    %287 = vrot.lane.b32.xlu0 %v281, 1
    %v288 = vpop.permute.xlu0 %287
    %v289 = vsel %vm88, %v286, %v288
    %v290 = vsel %vm88, %v288, %v286
    %v291 = vsel %vm93, %v290, 0.0
    %v292 = vsel %vm94, %v289, 0.0
    %293 = vrot.lane.b32.xlu0 %v276, 127
    %v294 = vpop.permute.xlu0 %293
    %295 = vrot.lane.b32.xlu0 %v281, 127
    %v296 = vpop.permute.xlu0 %295
    %v297 = vsel %vm101, %v294, %v296
    %v298 = vsel %vm101, %v296, %v294
    %v299 = vsel %vm106, %v297, 0.0
    %v300 = vsel %vm107, %v298, 0.0
    %v301 = vld [vmem:[%s5] sm:$0xff]
    %303 = vset.pattern.permute.xlu0 0
    %304 = vperm.xlu0 %303, %v301
    %v305 = vpop.permute.xlu0 %304
    %v308 = vsel %vm116, %v284, 0
    %310 = vmatprep.subr.mxu0 %v292
    %311 = vmatpush1.msra.mxu0 %v291
    %312 = vmatprep.subr.mxu0 %v281
    %313 = vmatpush1.msra.mxu0 %v276
    %314 = vmatprep.subr.mxu0 %v300
    %315 = vmatpush1.msra.mxu0 %v299
    %316 = vmatprep.subr.mxu0 0.0
    %317 = vmatpush1.msra.mxu0 0.0
    %318 = vmatprep.subr.mxu0 0.0
    %319 = vmatpush1.msra.mxu0 0.0
    %320 = vmatprep.subr.mxu0 0.0
    %321 = vmatpush1.msra.mxu0 0.0
    %322 = vmatprep.subr.mxu0 0.0
    %323 = vmatpush1.msra.mxu0 0.0
    %324 = vmatprep.subr.mxu0 0.0
    %325 = vmatpush1.msra.mxu0 0.0
    %326 = vmatprep.subr.mxu0 0.0
    %327 = vmatpush1.msra.mxu0 0.0
    %328 = vmatprep.subr.mxu0 0.0
    %329 = vmatpush1.msra.mxu0 0.0
    %330 = vmatprep.subr.mxu0 0.0
    %331 = vmatpush1.msra.mxu0 0.0
    %332 = vmatprep.subr.mxu0 0.0
    %333 = vmatpush1.msra.mxu0 0.0
    %334 = vmatprep.subr.mxu0 0.0
    %335 = vmatpush1.msra.mxu0 0.0
    %336 = vmatprep.subr.mxu0 0.0
    %337 = vmatpush1.msra.mxu0 0.0
    %338 = vmatprep.subr.mxu0 0.0
    %339 = vmatpush1.msra.mxu0 0.0
    %340 = vmatprep.subr.mxu0 0.0
    %341 = vmatpush1.msra.mxu0 0.0
    %342 = vmatprep.subr.mxu0 0.0
    %343 = vmatpush1.msra.mxu0 0.0
    %344 = vmatprep.subr.mxu0 0.0
    %345 = vmatpush1.msra.mxu0 0.0
    %346 = vmatprep.subr.mxu0 0.0
    %347 = vmatpush1.msra.mxu0 0.0
    %348 = vmatprep.subr.mxu0 0.0
    %349 = vmatpush1.msra.mxu0 0.0
    %350 = vmatprep.subr.mxu0 0.0
    %351 = vmatpush1.msra.mxu0 0.0
    %352 = vmatprep.subr.mxu0 0.0
    %353 = vmatpush1.msra.mxu0 0.0
    %354 = vmatprep.subr.mxu0 0.0
    %355 = vmatpush1.msra.mxu0 0.0
    %356 = vmatprep.subr.mxu0 0.0
    %357 = vmatpush1.msra.mxu0 0.0
    %358 = vmatprep.subr.mxu0 0.0
    %359 = vmatpush1.msra.mxu0 0.0
    %360 = vmatprep.subr.mxu0 0.0
    %361 = vmatpush1.msra.mxu0 0.0
    %362 = vmatprep.subr.mxu0 0.0
    %363 = vmatpush1.msra.mxu0 0.0
    %364 = vmatprep.subr.mxu0 0.0
    %365 = vmatpush1.msra.mxu0 0.0
    %366 = vmatprep.subr.mxu0 0.0
    %367 = vmatpush1.msra.mxu0 0.0
    %368 = vmatprep.subr.mxu0 0.0
    %369 = vmatpush1.msra.mxu0 0.0
    %370 = vmatprep.subr.mxu0 0.0
    %371 = vmatpush1.msra.mxu0 0.0
    %372 = vmatprep.subr.mxu0 0.0
    %373 = vmatpush1.msra.mxu0 0.0
    %374 = vmatprep.mubr.f32.mxu0 0.0
    %375 = vmatmul.mubr.f32.gmra.mrb[0].mxu0 %v308
    %v376 = vpop.f32.mrb[0].mxu0
    %v377 = vadd.f32 %v305, %v376
    %v378 = vpop.f32.mrb[0].mxu0
    %v379 = vadd.f32 %v305, %v378
    %380 = vdwg.mxu0
    %381 = vst [vmem:[#allocation7] sm:$0xff] %v377
    %382 = vst [vmem:[#allocation7 + $0x8] sm:$0xff] %v379
    // Predicated region
    $region34: #{tpu_custom_call.1} parent=1 // pred_check
      _
    $region35: #{tpu_custom_call.1} parent=1 // pred_check_branch
      %384 = sbr.rel (0) target = $region37
    $region36: #{tpu_custom_call.1} parent=1 // pred_region
      %s386 = ssub.s32 256, 256
      %387 = vsyncadd [#allocation4], %s386
      %s389 = sshll.u32 [#allocation7], 4
      %s390 = int_to_ptr.vmem [resolvable:$true] %s389
      %392 = dma.vmem_to_hbm [thread:$0]  %s390, 256, %s6, [#allocation4]
    $region37: #{tpu_custom_call.1} parent=1 // pred_fallthru
      _
    // Predicated region
    $region38: #{tpu_custom_call.1} parent=1 // pred_check
      _
    $region39: #{tpu_custom_call.1} parent=1 // pred_check_branch
      %394 = sbr.rel (0) target = $region41
    $region40: #{tpu_custom_call.1} parent=1 // pred_region
      %395 = dma.done [#allocation4], 256
    $region41: #{tpu_custom_call.1} parent=1 // pred_fallthru
      _
    %396 = vsyncpa [#allocation3], 1
    %397 = vsyncpa [#allocation6], 1
    %398 = vsyncpa [#allocation4], 1

</llo_original>
